<compile_context>
chip_gen: v5e
topology: v5e:2x2
jax: 0.10.0
libtpu: 0.0.40
codegen_flags: <defaults>
</compile_context>

<pallas_src>
import jax
import jax.numpy as jnp
from jax.experimental import pallas as pl
from jax.experimental.pallas import tpu as pltpu


def _round_up(n, m):
    return ((n + m - 1) // m) * m


def _cdiv(a, b):
    return (a + b - 1) // b


def simplenet_kernel(x_ref, w1_ref, b1_ref, w2_ref, b2_ref, seg_ref, o_ref):
    """One batch tile of softmax(relu(relu(x@W1+b1)@W2+b2)); P samples per row.

    x_ref   : (tile_bp, P*Din)  f32   -- P consecutive samples packed along lanes
    w1_ref  : (P*Din, P*H)      bf16  -- kron(I_P, W1)
    b1_ref  : (1, P*H)          f32   -- b1 tiled P times
    w2_ref  : (P*H, P*Dout)     bf16  -- kron(I_P, W2)
    b2_ref  : (1, P*Dout)       f32
    seg_ref : (P*Dout, P*Dout)  f32   -- kron(I_P, ones(Dout,Dout)): per-sample sum
    o_ref   : lane-dense view of this tile's (tile_b, Dout) probabilities
    """
    # Layer 1: cast the f32 input tile to bf16 in-kernel (VPU, hidden under the
    # DMA pipeline) and run the block-diagonal matmul on the MXU, f32 accumulate.
    x = x_ref[...].astype(jnp.bfloat16)
    h = jnp.dot(x, w1_ref[...], preferred_element_type=jnp.float32)
    h = jnp.maximum(h + b1_ref[...], 0.0)

    # Layer 2: (tile_bp, P*Dout) logits, ReLU'd per the reference module.
    y = jnp.dot(h.astype(jnp.bfloat16), w2_ref[...],
                preferred_element_type=jnp.float32)
    y = jnp.maximum(y + b2_ref[...], 0.0)

    # Softmax over each sample's Dout lanes.  A single max per packed row is
    # subtracted for all P samples; softmax is shift-invariant per sample so this
    # is exact (y >= 0 keeps exp() well inside f32 range; underflow would require
    # >~90 logit spread between samples in one packed row -- pathological).
    m = jnp.max(y, axis=1, keepdims=True)
    e = jnp.exp(y - m)
    # Per-sample sum, broadcast back to every lane of its group, via a tiny
    # block-diagonal ones matmul on the otherwise-idle MXU.
    denom = jnp.dot(e, seg_ref[...], preferred_element_type=jnp.float32)
    p = e / denom  # exact normalization (rows sum to 1 in f32)

    # Lane-dense store: row-major flatten of the tile's probabilities.
    o_ref[...] = p.reshape(o_ref.shape).astype(o_ref.dtype)


def _choose_pack(Din, H, Dout):
    """Largest pack factor P with P*Dout <= 128 lanes and modest widened layers."""
    for P in (8, 4, 2):
        if P * Dout <= 128 and P * H <= 256 and P * Din <= 4096:
            return P
    return 1


def simplenet_forward(x, w1, b1, w2, b2, *, tile_b=None, out_dtype=jnp.float32):
    B, Din = x.shape
    H = w1.shape[1]
    Dout = w2.shape[1]
    b1 = jnp.reshape(b1, (1, H)).astype(jnp.float32)
    b2 = jnp.reshape(b2, (1, Dout)).astype(jnp.float32)

    P = _choose_pack(Din, H, Dout)
    row_align = 8 * P  # packed rows (tile_b / P) must be a multiple of 8

    # Batch tiling: aim for ~8 grid steps (>=4 per v7x TensorCore) while keeping
    # >=256 rows/step so the ~0.35us per-step overhead stays negligible; cap 2048.
    Bp0 = _round_up(B, row_align)
    if tile_b is None:
        tile_b = min(2048, max(256, _cdiv(Bp0, 8)))
    tile_b = _round_up(min(tile_b, Bp0), row_align)
    Bp = _round_up(B, tile_b)
    if Bp != B:
        # Only ragged batches pay a pad pass; zero rows go through softmax safely.
        x = jnp.pad(x, ((0, Bp - B), (0, 0)))

    # Free row-major reinterpretation: P consecutive samples per packed row.
    x_packed = jnp.reshape(x, (Bp // P, P * Din))

    # Tiny resident operands: block-diagonal weights (bf16 for the MXU), tiled
    # biases (f32), and the per-sample-sum ones matrix (f32).
    eye_p = jnp.eye(P, dtype=jnp.float32)
    w1_big = jnp.kron(eye_p, w1.astype(jnp.float32)).astype(jnp.bfloat16)
    w2_big = jnp.kron(eye_p, w2.astype(jnp.float32)).astype(jnp.bfloat16)
    b1_big = jnp.tile(b1, (1, P))
    b2_big = jnp.tile(b2, (1, P))
    seg = jnp.kron(eye_p, jnp.ones((Dout, Dout), jnp.float32))

    tile_bp = tile_b // P
    width_y = P * Dout
    tile_elems = tile_bp * width_y
    if tile_elems % 128 == 0 and (tile_elems // 128) % 8 == 0:
        # Fully lane-dense output slab: full 128-lane rows (no masked stores).
        out_shape2d = (Bp * Dout // 128, 128)
        out_block = (tile_elems // 128, 128)
    else:
        # Fallback: natural packed layout (still P*Dout lanes wide per row).
        out_shape2d = (Bp // P, width_y)
        out_block = (tile_bp, width_y)

    out = pl.pallas_call(
        simplenet_kernel,
        out_shape=jax.ShapeDtypeStruct(out_shape2d, out_dtype),
        grid=(Bp // tile_b,),
        in_specs=[
            pl.BlockSpec((tile_bp, P * Din), lambda i: (i, 0)),   # x tile (pipelined)
            pl.BlockSpec((P * Din, P * H), lambda i: (0, 0)),     # W1_big (resident)
            pl.BlockSpec((1, P * H), lambda i: (0, 0)),           # b1
            pl.BlockSpec((P * H, width_y), lambda i: (0, 0)),     # W2_big
            pl.BlockSpec((1, width_y), lambda i: (0, 0)),         # b2
            pl.BlockSpec((width_y, width_y), lambda i: (0, 0)),   # seg-sum matrix
        ],
        out_specs=pl.BlockSpec(out_block, lambda i: (i, 0)),
        compiler_params=pltpu.CompilerParams(
            dimension_semantics=("parallel",),  # batch tiles shard across TCs (v7x)
        ),
    )(x_packed, w1_big, b1_big, w2_big, b2_big, seg)

    # Free row-major reinterpretation back to (Bp, Dout); slice off any padding.
    out = jnp.reshape(out, (Bp, Dout))
    return out[:B] if Bp != B else out


def init_params(key, Din, H, Dout):
    # Deterministic init mimicking nn.Linear's uniform(-1/sqrt(fan_in), 1/sqrt(fan_in)).
    k1, k2, k3, k4 = jax.random.split(key, 4)
    lim1 = 1.0 / jnp.sqrt(jnp.float32(Din))
    lim2 = 1.0 / jnp.sqrt(jnp.float32(H))
    w1 = jax.random.uniform(k1, (Din, H), jnp.float32, -lim1, lim1)
    b1 = jax.random.uniform(k2, (1, H), jnp.float32, -lim1, lim1)
    w2 = jax.random.uniform(k3, (H, Dout), jnp.float32, -lim2, lim2)
    b2 = jax.random.uniform(k4, (1, Dout), jnp.float32, -lim2, lim2)
    return w1, b1, w2, b2


def reference_forward(x, w1, b1, w2, b2, *, match_kernel_precision=False):
    def rnd(a):
        return a.astype(jnp.bfloat16).astype(jnp.float32) if match_kernel_precision else a
    h = jnp.maximum(rnd(x) @ rnd(w1) + b1, 0.0)
    y = jnp.maximum(rnd(h) @ rnd(w2) + b2, 0.0)
    return jax.nn.softmax(y, axis=1)


if __name__ == "__main__":
    # Shapes consistent with the module: Din=32, H=32, Dout=16 (pack factor P=8,
    # so P*Dout = 128 -> fully lane-dense output); batch gives 4 grid steps.
    Din, H, Dout = 32, 32, 16
    B = 1024

    key = jax.random.PRNGKey(0)
    kx, kp = jax.random.split(key)
    x = jax.random.normal(kx, (B, Din), jnp.float32)
    w1, b1, w2, b2 = init_params(kp, Din, H, Dout)

    out = jax.block_until_ready(simplenet_forward(x, w1, b1, w2, b2))
    assert out.shape == (B, Dout)

    ref_bf16 = reference_forward(x, w1, b1, w2, b2, match_kernel_precision=True)
    ref_f32 = reference_forward(x, w1, b1, w2, b2)
    assert jnp.allclose(out, ref_bf16, atol=3e-3, rtol=3e-3), "mismatch vs bf16-rounded reference"
    assert jnp.allclose(out, ref_f32, atol=5e-2, rtol=5e-2), "mismatch vs f32 reference"
    # exact divide in the kernel -> rows sum to 1 within f32 rounding
    assert jnp.allclose(jnp.sum(out, axis=1), jnp.ones((B,)), atol=1e-4)

    # Ragged batch (not a tile multiple): exercises the pad-and-slice path.
    B2 = 100
    out2 = jax.block_until_ready(simplenet_forward(x[:B2], w1, b1, w2, b2))
    assert out2.shape == (B2, Dout)
    assert jnp.allclose(out2, ref_bf16[:B2], atol=3e-3, rtol=3e-3)

    print("KERNEL_OK")
</pallas_src>

<mosaic_0001>
module attributes {stable_mosaic.version = 11 : i64} {
  func.func @simplenet_kernel(%arg0: i32, %arg1: memref<32x256xf32, #tpu.memory_space<vmem>>, %arg2: memref<256x256xbf16, #tpu.memory_space<vmem>>, %arg3: memref<1x256xf32, #tpu.memory_space<vmem>>, %arg4: memref<256x128xbf16, #tpu.memory_space<vmem>>, %arg5: memref<1x128xf32, #tpu.memory_space<vmem>>, %arg6: memref<128x128xf32, #tpu.memory_space<vmem>>, %arg7: memref<32x128xf32, #tpu.memory_space<vmem>>) attributes {dimension_semantics = [#tpu.dimension_semantics<parallel>], iteration_bounds = array<i64: 4>, scalar_prefetch = 0 : i64, scratch_operands = 0 : i64, tpu.core_type = #tpu.core_type<tc>, window_params = [{transform_indices = @transform_0, window_bounds = array<i64: 32, 256>}, {pipeline_mode = #tpu.pipeline_mode<synchronous>, transform_indices = @transform_1, window_bounds = array<i64: 256, 256>}, {pipeline_mode = #tpu.pipeline_mode<synchronous>, transform_indices = @transform_2, window_bounds = array<i64: 1, 256>}, {pipeline_mode = #tpu.pipeline_mode<synchronous>, transform_indices = @transform_3, window_bounds = array<i64: 256, 128>}, {pipeline_mode = #tpu.pipeline_mode<synchronous>, transform_indices = @transform_4, window_bounds = array<i64: 1, 128>}, {pipeline_mode = #tpu.pipeline_mode<synchronous>, transform_indices = @transform_5, window_bounds = array<i64: 128, 128>}, {transform_indices = @transform_6, window_bounds = array<i64: 32, 128>}]} {
    %c0 = arith.constant 0 : index
    %c0_0 = arith.constant 0 : index
    %0 = vector.load %arg1[%c0, %c0_0] : memref<32x256xf32, #tpu.memory_space<vmem>>, vector<32x256xf32>
    %1 = arith.truncf %0 : vector<32x256xf32> to vector<32x256xbf16>
    %c0_1 = arith.constant 0 : index
    %c0_2 = arith.constant 0 : index
    %2 = vector.load %arg2[%c0_1, %c0_2] : memref<256x256xbf16, #tpu.memory_space<vmem>>, vector<256x256xbf16>
    %cst = arith.constant dense<0.000000e+00> : vector<32x256xf32>
    %3 = tpu.matmul %1, %2, %cst {dimension_numbers = #tpu.dot_dimension_numbers<[1], [0], [0], [1], [0, 0, 1, 1], [], []>} : vector<32x256xbf16>, vector<256x256xbf16>, vector<32x256xf32> -> vector<32x256xf32>
    %c0_3 = arith.constant 0 : index
    %c0_4 = arith.constant 0 : index
    %4 = vector.load %arg3[%c0_3, %c0_4] : memref<1x256xf32, #tpu.memory_space<vmem>>, vector<1x256xf32>
    %5 = vector.broadcast %4 : vector<1x256xf32> to vector<32x256xf32>
    %6 = arith.addf %3, %5 : vector<32x256xf32>
    %cst_5 = arith.constant 0.000000e+00 : f32
    %7 = vector.broadcast %cst_5 : f32 to vector<32x256xf32>
    %8 = arith.maximumf %6, %7 : vector<32x256xf32>
    %9 = arith.truncf %8 : vector<32x256xf32> to vector<32x256xbf16>
    %c0_6 = arith.constant 0 : index
    %c0_7 = arith.constant 0 : index
    %10 = vector.load %arg4[%c0_6, %c0_7] : memref<256x128xbf16, #tpu.memory_space<vmem>>, vector<256x128xbf16>
    %cst_8 = arith.constant dense<0.000000e+00> : vector<32x128xf32>
    %11 = tpu.matmul %9, %10, %cst_8 {dimension_numbers = #tpu.dot_dimension_numbers<[1], [0], [0], [1], [0, 0, 1, 1], [], []>} : vector<32x256xbf16>, vector<256x128xbf16>, vector<32x128xf32> -> vector<32x128xf32>
    %c0_9 = arith.constant 0 : index
    %c0_10 = arith.constant 0 : index
    %12 = vector.load %arg5[%c0_9, %c0_10] : memref<1x128xf32, #tpu.memory_space<vmem>>, vector<1x128xf32>
    %13 = vector.broadcast %12 : vector<1x128xf32> to vector<32x128xf32>
    %14 = arith.addf %11, %13 : vector<32x128xf32>
    %cst_11 = arith.constant 0.000000e+00 : f32
    %15 = vector.broadcast %cst_11 : f32 to vector<32x128xf32>
    %16 = arith.maximumf %14, %15 : vector<32x128xf32>
    %cst_12 = arith.constant dense<0xFF800000> : vector<32xf32>
    %17 = vector.multi_reduction <maximumf>, %16, %cst_12 [1] : vector<32x128xf32> to vector<32xf32>
    %18 = vector.shape_cast %17 : vector<32xf32> to vector<32x1xf32>
    %19 = vector.broadcast %18 : vector<32x1xf32> to vector<32x128xf32>
    %20 = arith.subf %16, %19 : vector<32x128xf32>
    %21 = math.exp %20 : vector<32x128xf32>
    %c0_13 = arith.constant 0 : index
    %c0_14 = arith.constant 0 : index
    %22 = vector.load %arg6[%c0_13, %c0_14] : memref<128x128xf32, #tpu.memory_space<vmem>>, vector<128x128xf32>
    %cst_15 = arith.constant dense<0.000000e+00> : vector<32x128xf32>
    %23 = tpu.matmul %21, %22, %cst_15 {dimension_numbers = #tpu.dot_dimension_numbers<[1], [0], [0], [1], [0, 0, 1, 1], [], []>} : vector<32x128xf32>, vector<128x128xf32>, vector<32x128xf32> -> vector<32x128xf32>
    %24 = arith.divf %21, %23 : vector<32x128xf32>
    %c0_16 = arith.constant 0 : index
    %c0_17 = arith.constant 0 : index
    %25 = vector.load %arg7[%c0_16, %c0_17] : memref<32x128xf32, #tpu.memory_space<vmem>>, vector<32x128xf32>
    tpu.vector_store %arg7[%c0_16, %c0_17], %24 {strides = array<i32>} : memref<32x128xf32, #tpu.memory_space<vmem>>, vector<32x128xf32>,
    return
  }
  func.func @transform_0(%arg0: i32) -> (i32, i32) {
    %c0_i32 = arith.constant 0 : i32
    %c0_i32_0 = arith.constant 0 : i32
    return %arg0, %c0_i32 : i32, i32
  }
  func.func @transform_1(%arg0: i32) -> (i32, i32) {
    %c0_i32 = arith.constant 0 : i32
    %c0_i32_0 = arith.constant 0 : i32
    %c0_i32_1 = arith.constant 0 : i32
    return %c0_i32, %c0_i32_0 : i32, i32
  }
  func.func @transform_2(%arg0: i32) -> (i32, i32) {
    %c0_i32 = arith.constant 0 : i32
    %c0_i32_0 = arith.constant 0 : i32
    %c0_i32_1 = arith.constant 0 : i32
    return %c0_i32, %c0_i32_0 : i32, i32
  }
  func.func @transform_3(%arg0: i32) -> (i32, i32) {
    %c0_i32 = arith.constant 0 : i32
    %c0_i32_0 = arith.constant 0 : i32
    %c0_i32_1 = arith.constant 0 : i32
    return %c0_i32, %c0_i32_0 : i32, i32
  }
  func.func @transform_4(%arg0: i32) -> (i32, i32) {
    %c0_i32 = arith.constant 0 : i32
    %c0_i32_0 = arith.constant 0 : i32
    %c0_i32_1 = arith.constant 0 : i32
    return %c0_i32, %c0_i32_0 : i32, i32
  }
  func.func @transform_5(%arg0: i32) -> (i32, i32) {
    %c0_i32 = arith.constant 0 : i32
    %c0_i32_0 = arith.constant 0 : i32
    %c0_i32_1 = arith.constant 0 : i32
    return %c0_i32, %c0_i32_0 : i32, i32
  }
  func.func @transform_6(%arg0: i32) -> (i32, i32) {
    %c0_i32 = arith.constant 0 : i32
    %c0_i32_0 = arith.constant 0 : i32
    return %arg0, %c0_i32 : i32, i32
  }
}

</mosaic_0001>

<llo_original>
// kernel: tpu_custom_call.1
$region0: #{tpu_custom_call.1}
  #allocation0 [shape = 'u32[]', space=smem, size = 0x4, offset = 0x4, fixed_abs, tag = 'smem constant byte address 0x4 - core index']
  #allocation1 [shape = 'u32[72,128]{1,0:T(1,128)}', space=vmem, size = 0x9000, scoped, tag = 'internal scratch']
  %s0 = inlined_call_operand.hbm [shape: f32[128,256], index: 0, kind: input, shape index: {}]
  %s1 = inlined_call_operand.hbm [shape: bf16[256,256], index: 1, kind: input, shape index: {}]
  %s2 = inlined_call_operand.hbm [shape: f32[1,256], index: 2, kind: input, shape index: {}]
  %s3 = inlined_call_operand.hbm [shape: bf16[256,128], index: 3, kind: input, shape index: {}]
  %s4 = inlined_call_operand.vmem [shape: f32[1,128], index: 4, kind: input, shape index: {}]
  %s5 = inlined_call_operand.hbm [shape: f32[128,128], index: 5, kind: input, shape index: {}]
  %s6 = inlined_call_operand.hbm [shape: f32[128,128], index: 6, kind: output, shape index: {}]
  %s7 = sld [smem:[#allocation0]]
  $region77: #{tpu_custom_call.1} parent=0
    _
  %s9 = ssub.s32 1, %s7
  %s10 = scalar_select 0, %s9, %s7
  $region1: #{tpu_custom_call.1} parent=0
    #allocation2 [shape = 'u8[65536]{0}', space=vmem, size = 0x10000, scoped, tag = 'input window, operand 0']
    #allocation3 [shape = 's32[2]{0}', space=sflag, size = 0x8, scoped, tag = 'scoped memory for tpu_custom_call.1']
    #allocation4 [shape = 's32[2]{0}', space=sflag, size = 0x8, scoped, tag = 'scoped memory for tpu_custom_call.1']
    #allocation5 [shape = 'u8[131072]{0}', space=vmem, size = 0x20000, scoped, tag = 'input window, operand 1, single buffered']
    #allocation6 [shape = 's32[1]{0}', space=sflag, size = 0x4, scoped, tag = 'scoped memory for tpu_custom_call.1']
    #allocation7 [shape = 'u8[1024]{0}', space=vmem, size = 0x400, scoped, tag = 'input window, operand 2, single buffered']
    #allocation8 [shape = 'u8[65536]{0}', space=vmem, size = 0x10000, scoped, tag = 'input window, operand 3, single buffered']
    #allocation9 [shape = 's32[1]{0}', space=sflag, size = 0x4, scoped, tag = 'scoped memory for tpu_custom_call.1']
    #allocation10 [shape = 'u8[65536]{0}', space=vmem, size = 0x10000, scoped, tag = 'input window, operand 5, single buffered']
    #allocation11 [shape = 'u8[32768]{0}', space=vmem, size = 0x8000, scoped, tag = 'output window, operand 0']
    %11 = vsyncpa [#allocation3], 0
    %s12 = scalar_lea.sflag [#allocation3], 1
    %13 = vsyncpa %s12, 0
    %14 = vsyncpa [#allocation6], 0
    %15 = vsyncpa [#allocation9], 0
    %16 = vsyncpa [#allocation4], 0
    %s17 = scalar_lea.sflag [#allocation4], 1
    %18 = vsyncpa %s17, 0
    loop: start=0, step=1, limit=6
    $region2: #{tpu_custom_call.1} parent=1 // loop_pre_header
      _
    $region3: #{tpu_custom_call.1} parent=1 // loop_header
      %s20 = sphi 0, %s24
      %p21 = scmp.ge.s32.totalorder %s20, 6
      %s30 = sphi 0, %s32
      %s33 = sphi 0, %s30
      %s34 = sphi 0, %s33
      %s50 = sphi 0, %s34
      %s54 = sphi 0, %s54
      %s56 = sphi 0, %s54
      %s57 = sphi 0, %s56
      %s71 = sphi 0, %s57
      %s75 = sphi 0, %s75
      %s77 = sphi 0, %s75
      %s78 = sphi 0, %s77
      %s92 = sphi 0, %s78
      %s96 = sphi 0, %s96
      %s98 = sphi 0, %s96
      %s99 = sphi 0, %s98
      %s113 = sphi 0, %s99
      %s117 = sphi 0, %s117
      %s119 = sphi 0, %s117
      %s120 = sphi 0, %s119
      %s134 = sphi 0, %s120
      %s138 = sphi 0, %s138
      %s140 = sphi 0, %s138
      %s141 = sphi 0, %s140
      %s155 = sphi 0, %s141
      %s161 = sphi 0, %s163
      %s164 = sphi 0, %s161
      %s165 = sphi 0, %s164
      %s181 = sphi 0, %s165
    $region4: #{tpu_custom_call.1} parent=1 // loop_header_branch
      %23 = sbr.rel (%p21) target = $region8
    $region5: #{tpu_custom_call.1} parent=1 // loop_body
      %s25 = ssub.s32 %s20, 1
      %s26 = ssub.s32 %s20, 2
      %s27 = sadd.s32 %s20, 1
      %s28 = ssub.s32 %s20, %s27
      %p29 = scmp.eq.s32.totalorder %s28, 0
      %s31 = sadd.s32 %s30, 1
      %s32 = scalar_select %p29, %s30, %s31
      %p35 = pneg %p29
      %p36 = scmp.eq.s32.totalorder %s20, 3
      %p37 = por %p35, %p36
      %p38 = scmp.ne.s32.totalorder %s30, %s33
      %p39 = scmp.eq.s32.totalorder %s20, 0
      %p40 = por %p38, %p39
      %p41 = scmp.ne.s32.totalorder %s30, %s33
      %p42 = scmp.eq.s32.totalorder %s25, 3
      %p43 = por %p41, %p42
      %p44 = scmp.ne.s32.totalorder %s33, %s34
      %p45 = scmp.eq.s32.totalorder %s25, 0
      %p46 = por %p44, %p45
      %p47 = scmp.ne.s32.totalorder %s33, %s34
      %p48 = scmp.eq.s32.totalorder %s26, 3
      %p49 = por %p47, %p48
      %p51 = scmp.ne.s32.totalorder %s34, %s50
      %p52 = scmp.eq.s32.totalorder %s26, 0
      %p53 = por %p51, %p52
      %s55 = sadd.s32 %s54, 1
      %p58 = scmp.eq.s32.totalorder %s20, 3
      %p59 = scmp.ne.s32.totalorder %s54, %s56
      %p60 = scmp.eq.s32.totalorder %s20, 0
      %p61 = por %p59, %p60
      %p62 = scmp.ne.s32.totalorder %s54, %s56
      %p63 = scmp.eq.s32.totalorder %s25, 3
      %p64 = por %p62, %p63
      %p65 = scmp.ne.s32.totalorder %s56, %s57
      %p66 = scmp.eq.s32.totalorder %s25, 0
      %p67 = por %p65, %p66
      %p68 = scmp.ne.s32.totalorder %s56, %s57
      %p69 = scmp.eq.s32.totalorder %s26, 3
      %p70 = por %p68, %p69
      %p72 = scmp.ne.s32.totalorder %s57, %s71
      %p73 = scmp.eq.s32.totalorder %s26, 0
      %p74 = por %p72, %p73
      %s76 = sadd.s32 %s75, 1
      %p79 = scmp.eq.s32.totalorder %s20, 3
      %p80 = scmp.ne.s32.totalorder %s75, %s77
      %p81 = scmp.eq.s32.totalorder %s20, 0
      %p82 = por %p80, %p81
      %p83 = scmp.ne.s32.totalorder %s75, %s77
      %p84 = scmp.eq.s32.totalorder %s25, 3
      %p85 = por %p83, %p84
      %p86 = scmp.ne.s32.totalorder %s77, %s78
      %p87 = scmp.eq.s32.totalorder %s25, 0
      %p88 = por %p86, %p87
      %p89 = scmp.ne.s32.totalorder %s77, %s78
      %p90 = scmp.eq.s32.totalorder %s26, 3
      %p91 = por %p89, %p90
      %p93 = scmp.ne.s32.totalorder %s78, %s92
      %p94 = scmp.eq.s32.totalorder %s26, 0
      %p95 = por %p93, %p94
      %s97 = sadd.s32 %s96, 1
      %p100 = scmp.eq.s32.totalorder %s20, 3
      %p101 = scmp.ne.s32.totalorder %s96, %s98
      %p102 = scmp.eq.s32.totalorder %s20, 0
      %p103 = por %p101, %p102
      %p104 = scmp.ne.s32.totalorder %s96, %s98
      %p105 = scmp.eq.s32.totalorder %s25, 3
      %p106 = por %p104, %p105
      %p107 = scmp.ne.s32.totalorder %s98, %s99
      %p108 = scmp.eq.s32.totalorder %s25, 0
      %p109 = por %p107, %p108
      %p110 = scmp.ne.s32.totalorder %s98, %s99
      %p111 = scmp.eq.s32.totalorder %s26, 3
      %p112 = por %p110, %p111
      %p114 = scmp.ne.s32.totalorder %s99, %s113
      %p115 = scmp.eq.s32.totalorder %s26, 0
      %p116 = por %p114, %p115
      %s118 = sadd.s32 %s117, 1
      %p121 = scmp.eq.s32.totalorder %s20, 3
      %p122 = scmp.ne.s32.totalorder %s117, %s119
      %p123 = scmp.eq.s32.totalorder %s20, 0
      %p124 = por %p122, %p123
      %p125 = scmp.ne.s32.totalorder %s117, %s119
      %p126 = scmp.eq.s32.totalorder %s25, 3
      %p127 = por %p125, %p126
      %p128 = scmp.ne.s32.totalorder %s119, %s120
      %p129 = scmp.eq.s32.totalorder %s25, 0
      %p130 = por %p128, %p129
      %p131 = scmp.ne.s32.totalorder %s119, %s120
      %p132 = scmp.eq.s32.totalorder %s26, 3
      %p133 = por %p131, %p132
      %p135 = scmp.ne.s32.totalorder %s120, %s134
      %p136 = scmp.eq.s32.totalorder %s26, 0
      %p137 = por %p135, %p136
      %s139 = sadd.s32 %s138, 1
      %p142 = scmp.eq.s32.totalorder %s20, 3
      %p143 = scmp.ne.s32.totalorder %s138, %s140
      %p144 = scmp.eq.s32.totalorder %s20, 0
      %p145 = por %p143, %p144
      %p146 = scmp.ne.s32.totalorder %s138, %s140
      %p147 = scmp.eq.s32.totalorder %s25, 3
      %p148 = por %p146, %p147
      %p149 = scmp.ne.s32.totalorder %s140, %s141
      %p150 = scmp.eq.s32.totalorder %s25, 0
      %p151 = por %p149, %p150
      %p152 = scmp.ne.s32.totalorder %s140, %s141
      %p153 = scmp.eq.s32.totalorder %s26, 3
      %p154 = por %p152, %p153
      %p156 = scmp.ne.s32.totalorder %s141, %s155
      %p157 = scmp.eq.s32.totalorder %s26, 0
      %p158 = por %p156, %p157
      %s159 = ssub.s32 %s20, %s27
      %p160 = scmp.eq.s32.totalorder %s159, 0
      %s162 = sadd.s32 %s161, 1
      %s163 = scalar_select %p160, %s161, %s162
      %p166 = pneg %p160
      %p167 = scmp.eq.s32.totalorder %s20, 3
      %p168 = por %p166, %p167
      %p169 = scmp.ne.s32.totalorder %s161, %s164
      %p170 = scmp.eq.s32.totalorder %s20, 0
      %p171 = por %p169, %p170
      %p172 = scmp.ne.s32.totalorder %s161, %s164
      %p173 = scmp.eq.s32.totalorder %s25, 3
      %p174 = por %p172, %p173
      %p175 = scmp.ne.s32.totalorder %s164, %s165
      %p176 = scmp.eq.s32.totalorder %s25, 0
      %p177 = por %p175, %p176
      %p178 = scmp.ne.s32.totalorder %s164, %s165
      %p179 = scmp.eq.s32.totalorder %s26, 3
      %p180 = por %p178, %p179
      %p182 = scmp.ne.s32.totalorder %s165, %s181
      %p183 = scmp.eq.s32.totalorder %s26, 0
      %p184 = por %p182, %p183
      %p185 = scmp.le.s32.totalorder 1, %s20
      %p186 = scmp.lt.s32.totalorder %s20, 5
      %p187 = pnand %p185, %p186
      %p188 = pneg %p187
      // Predicated region
      $region9: #{tpu_custom_call.1} parent=5 // pred_check
        _
      $region10: #{tpu_custom_call.1} parent=5 // pred_check_branch
        %190 = sbr.rel (%p187) target = $region12
      $region11: #{tpu_custom_call.1} parent=5 // pred_region
        %s191 = ssub.s32 %s20, 1
        // Predicated region
        $region13: #{tpu_custom_call.1} parent=11 // pred_check
          %p192 = pneg %p67
        $region14: #{tpu_custom_call.1} parent=11 // pred_check_branch
          %194 = sbr.rel (%p192) target = $region16
        $region15: #{tpu_custom_call.1} parent=11 // pred_region
          %196 = vsyncadd [#allocation6], 0
          %s197 = sshll.u32 %s1, 4
          %s198 = int_to_ptr.hbm [resolvable:$true] %s197
          %s199 = sshll.u32 [#allocation5], 4
          %s200 = int_to_ptr.vmem [resolvable:$true] %s199
          %205 = dma.hbm_to_vmem [thread:$0]  %s198, 4096, %s200, [#allocation6], 128, 128, 8
        $region16: #{tpu_custom_call.1} parent=11 // pred_fallthru
          _
        // Predicated region
        $region17: #{tpu_custom_call.1} parent=11 // pred_check
          %p206 = pneg %p88
        $region18: #{tpu_custom_call.1} parent=11 // pred_check_branch
          %208 = sbr.rel (%p206) target = $region20
        $region19: #{tpu_custom_call.1} parent=11 // pred_region
          %210 = vsyncadd [#allocation6], 0
          %s212 = sshll.u32 %s2, 4
          %s213 = int_to_ptr.hbm [resolvable:$true] %s212
          %s214 = sshll.u32 [#allocation7], 4
          %s215 = int_to_ptr.vmem [resolvable:$true] %s214
          %217 = dma.hbm_to_vmem [thread:$0]  %s213, 32, %s215, [#allocation6]
        $region20: #{tpu_custom_call.1} parent=11 // pred_fallthru
          _
        // Predicated region
        $region21: #{tpu_custom_call.1} parent=11 // pred_check
          %p218 = pneg %p109
        $region22: #{tpu_custom_call.1} parent=11 // pred_check_branch
          %220 = sbr.rel (%p218) target = $region24
        $region23: #{tpu_custom_call.1} parent=11 // pred_region
          %222 = vsyncadd [#allocation9], 0
          %s223 = sshll.u32 %s3, 4
          %s224 = int_to_ptr.hbm [resolvable:$true] %s223
          %s225 = sshll.u32 [#allocation8], 4
          %s226 = int_to_ptr.vmem [resolvable:$true] %s225
          %231 = dma.hbm_to_vmem [thread:$0]  %s224, 2048, %s226, [#allocation9], 64, 64, 4
        $region24: #{tpu_custom_call.1} parent=11 // pred_fallthru
          _
        // Predicated region
        $region25: #{tpu_custom_call.1} parent=11 // pred_check
          %p232 = pneg %p130
        $region26: #{tpu_custom_call.1} parent=11 // pred_check_branch
          %234 = sbr.rel (%p232) target = $region28
        $region27: #{tpu_custom_call.1} parent=11 // pred_region
          _
        $region28: #{tpu_custom_call.1} parent=11 // pred_fallthru
          _
        // Predicated region
        $region29: #{tpu_custom_call.1} parent=11 // pred_check
          %p235 = pneg %p151
        $region30: #{tpu_custom_call.1} parent=11 // pred_check_branch
          %237 = sbr.rel (%p235) target = $region32
        $region31: #{tpu_custom_call.1} parent=11 // pred_region
          %239 = vsyncadd [#allocation9], 0
          %s240 = sshll.u32 %s5, 4
          %s241 = int_to_ptr.hbm [resolvable:$true] %s240
          %s242 = sshll.u32 [#allocation10], 4
          %s243 = int_to_ptr.vmem [resolvable:$true] %s242
          %248 = dma.hbm_to_vmem [thread:$0]  %s241, 2048, %s243, [#allocation9], 128, 128, 8
        $region32: #{tpu_custom_call.1} parent=11 // pred_fallthru
          _
      $region12: #{tpu_custom_call.1} parent=5 // pred_fallthru
        _
      %p249 = scmp.lt.s32.totalorder %s20, 4
      // Predicated region
      $region33: #{tpu_custom_call.1} parent=5 // pred_check
        %p250 = pneg %p249
      $region34: #{tpu_custom_call.1} parent=5 // pred_check_branch
        %252 = sbr.rel (%p250) target = $region36
      $region35: #{tpu_custom_call.1} parent=5 // pred_region
        // Predicated region
        $region37: #{tpu_custom_call.1} parent=35 // pred_check
          %p253 = pneg %p40
        $region38: #{tpu_custom_call.1} parent=35 // pred_check_branch
          %255 = sbr.rel (%p253) target = $region40
        $region39: #{tpu_custom_call.1} parent=35 // pred_region
          %s256 = sand.u32 %s30, 1
          %s257 = scalar_lea.sflag [#allocation3], %s256
          %s258 = sand.u32 %s30, 1
          %s259 = smul.addr %s258, 64
          %s260 = scalar_lea.vmem [#allocation2], %s259
          %s261 = smul.u32 4, %s20
          %263 = vsyncadd %s257, 0
          %s264 = smul.addr %s261, 2
          %s265 = smul.addr %s264, 8
          %s266 = scalar_lea.hbm %s0, %s265
          %s267 = sshll.u32 %s266, 4
          %s268 = int_to_ptr.hbm [resolvable:$true] %s267
          %s269 = sshll.u32 %s260, 4
          %s270 = int_to_ptr.vmem [resolvable:$true] %s269
          %275 = dma.hbm_to_vmem [thread:$0]  %s268, 1024, %s270, %s257, 256, 256, 16
        $region40: #{tpu_custom_call.1} parent=35 // pred_fallthru
          _
      $region36: #{tpu_custom_call.1} parent=5 // pred_fallthru
        _
      %p276 = scmp.le.s32.totalorder 1, %s20
      %p277 = scmp.lt.s32.totalorder %s20, 5
      %p278 = pnand %p276, %p277
      %p279 = pneg %p278
      // Predicated region
      $region41: #{tpu_custom_call.1} parent=5 // pred_check
        _
      $region42: #{tpu_custom_call.1} parent=5 // pred_check_branch
        %281 = sbr.rel (%p278) target = $region44
      $region43: #{tpu_custom_call.1} parent=5 // pred_region
        %s282 = ssub.s32 %s20, 1
        %s283 = sand.u32 %s33, 1
        %s284 = scalar_lea.sflag [#allocation3], %s283
        %s285 = sand.u32 %s33, 1
        %s286 = smul.addr %s285, 64
        %s287 = scalar_lea.vmem [#allocation2], %s286
        // Predicated region
        $region45: #{tpu_custom_call.1} parent=43 // pred_check
          %p288 = pneg %p46
        $region46: #{tpu_custom_call.1} parent=43 // pred_check_branch
          %290 = sbr.rel (%p288) target = $region48
        $region47: #{tpu_custom_call.1} parent=43 // pred_region
          %292 = dma.done %s284, 1024
        $region48: #{tpu_custom_call.1} parent=43 // pred_fallthru
          _
        // Predicated region
        $region49: #{tpu_custom_call.1} parent=43 // pred_check
          %p293 = pneg %p67
        $region50: #{tpu_custom_call.1} parent=43 // pred_check_branch
          %295 = sbr.rel (%p293) target = $region52
        $region51: #{tpu_custom_call.1} parent=43 // pred_region
          %297 = dma.done [#allocation6], 4096
        $region52: #{tpu_custom_call.1} parent=43 // pred_fallthru
          _
        // Predicated region
        $region53: #{tpu_custom_call.1} parent=43 // pred_check
          %p298 = pneg %p88
        $region54: #{tpu_custom_call.1} parent=43 // pred_check_branch
          %300 = sbr.rel (%p298) target = $region56
        $region55: #{tpu_custom_call.1} parent=43 // pred_region
          %302 = dma.done [#allocation6], 32
        $region56: #{tpu_custom_call.1} parent=43 // pred_fallthru
          _
        // Predicated region
        $region57: #{tpu_custom_call.1} parent=43 // pred_check
          %p303 = pneg %p109
        $region58: #{tpu_custom_call.1} parent=43 // pred_check_branch
          %305 = sbr.rel (%p303) target = $region60
        $region59: #{tpu_custom_call.1} parent=43 // pred_region
          %307 = dma.done [#allocation9], 2048
        $region60: #{tpu_custom_call.1} parent=43 // pred_fallthru
          _
        // Predicated region
        $region61: #{tpu_custom_call.1} parent=43 // pred_check
          %p308 = pneg %p151
        $region62: #{tpu_custom_call.1} parent=43 // pred_check_branch
          %310 = sbr.rel (%p308) target = $region64
        $region63: #{tpu_custom_call.1} parent=43 // pred_region
          %312 = dma.done [#allocation9], 2048
        $region64: #{tpu_custom_call.1} parent=43 // pred_fallthru
          _
        %s313 = sand.u32 %s33, 1
        %s314 = scalar_lea.sflag [#allocation3], %s313
        %s315 = sand.u32 %s33, 1
        %s316 = smul.addr %s315, 64
        %s317 = scalar_lea.vmem [#allocation2], %s316
        %p318 = pneg %p46
        %p319 = pneg %p43
        %p320 = pneg %p67
        %p321 = pneg %p64
        %p322 = pneg %p88
        %p323 = pneg %p85
        %p324 = pneg %p109
        %p325 = pneg %p106
        %p326 = pneg %p130
        %p327 = pneg %p127
        %p328 = pneg %p151
        %p329 = pneg %p148
        %p330 = pneg %p177
        %p331 = pneg %p174
        %s332 = sand.u32 %s164, 1
        %s333 = scalar_lea.sflag [#allocation4], %s332
        %s334 = sand.u32 %s164, 1
        %s335 = smul.addr %s334, 32
        %s336 = scalar_lea.vmem [#allocation11], %s335
        %s337 = smul.u32 4, %s25
        %s338 = smul.u32 4, %s25
        %v339 = vld [vmem:[%s287] sm:$0xff]
        %v340 = vld [vmem:[%s287 + $0x8] sm:$0xff]
        %v341 = vld [vmem:[%s287 + $0x10] sm:$0xff]
        %v342 = vld [vmem:[%s287 + $0x18] sm:$0xff]
        %v343 = vld [vmem:[%s287 + $0x20] sm:$0xff]
        %v344 = vld [vmem:[%s287 + $0x28] sm:$0xff]
        %v345 = vld [vmem:[%s287 + $0x30] sm:$0xff]
        %v346 = vld [vmem:[%s287 + $0x38] sm:$0xff]
        %v347 = vpack.c.bf16 %v341, %v339
        %v348 = vpack.c.bf16 %v342, %v340
        %v349 = vpack.c.bf16 %v345, %v343
        %v350 = vpack.c.bf16 %v346, %v344
        %v351 = vld [vmem:[#allocation5] sm:$0xff]
        %v352 = vld [vmem:[#allocation5 + $0x8] sm:$0xff]
        %v353 = vld [vmem:[#allocation5 + $0x10] sm:$0xff]
        %v354 = vld [vmem:[#allocation5 + $0x18] sm:$0xff]
        %v355 = vld [vmem:[#allocation5 + $0x20] sm:$0xff]
        %v356 = vld [vmem:[#allocation5 + $0x28] sm:$0xff]
        %v357 = vld [vmem:[#allocation5 + $0x30] sm:$0xff]
        %v358 = vld [vmem:[#allocation5 + $0x38] sm:$0xff]
        %v359 = vld [vmem:[#allocation5 + $0x40] sm:$0xff]
        %v360 = vld [vmem:[#allocation5 + $0x48] sm:$0xff]
        %v361 = vld [vmem:[#allocation5 + $0x50] sm:$0xff]
        %v362 = vld [vmem:[#allocation5 + $0x58] sm:$0xff]
        %v363 = vld [vmem:[#allocation5 + $0x60] sm:$0xff]
        %v364 = vld [vmem:[#allocation5 + $0x68] sm:$0xff]
        %v365 = vld [vmem:[#allocation5 + $0x70] sm:$0xff]
        %v366 = vld [vmem:[#allocation5 + $0x78] sm:$0xff]
        %v367 = vld [vmem:[#allocation5 + $0x80] sm:$0xff]
        %v368 = vld [vmem:[#allocation5 + $0x88] sm:$0xff]
        %v369 = vld [vmem:[#allocation5 + $0x90] sm:$0xff]
        %v370 = vld [vmem:[#allocation5 + $0x98] sm:$0xff]
        %v371 = vld [vmem:[#allocation5 + $0xa0] sm:$0xff]
        %v372 = vld [vmem:[#allocation5 + $0xa8] sm:$0xff]
        %v373 = vld [vmem:[#allocation5 + $0xb0] sm:$0xff]
        %v374 = vld [vmem:[#allocation5 + $0xb8] sm:$0xff]
        %v375 = vld [vmem:[#allocation5 + $0xc0] sm:$0xff]
        %v376 = vld [vmem:[#allocation5 + $0xc8] sm:$0xff]
        %v377 = vld [vmem:[#allocation5 + $0xd0] sm:$0xff]
        %v378 = vld [vmem:[#allocation5 + $0xd8] sm:$0xff]
        %v379 = vld [vmem:[#allocation5 + $0xe0] sm:$0xff]
        %v380 = vld [vmem:[#allocation5 + $0xe8] sm:$0xff]
        %v381 = vld [vmem:[#allocation5 + $0xf0] sm:$0xff]
        %v382 = vld [vmem:[#allocation5 + $0xf8] sm:$0xff]
        %v383 = vld [vmem:[#allocation7] sm:$0x3]
        %v385 = vperm.slane %v383, 0
        %v386 = vperm.slane %v383, 1
        %v421 = vunpack.c.l.b16 %v351
        %v422 = vunpack.c.h.b16 %v351
        %v423 = vunpack.c.l.b16 %v352
        %v424 = vunpack.c.h.b16 %v352
        %v425 = vunpack.c.l.b16 %v353
        %v426 = vunpack.c.h.b16 %v353
        %v427 = vunpack.c.l.b16 %v354
        %v428 = vunpack.c.h.b16 %v354
        %v429 = vunpack.c.l.b16 %v355
        %v430 = vunpack.c.h.b16 %v355
        %v431 = vunpack.c.l.b16 %v356
        %v432 = vunpack.c.h.b16 %v356
        %v433 = vunpack.c.l.b16 %v357
        %v434 = vunpack.c.h.b16 %v357
        %v435 = vunpack.c.l.b16 %v358
        %v436 = vunpack.c.h.b16 %v358
        %v437 = vunpack.c.l.b16 %v359
        %v438 = vunpack.c.h.b16 %v359
        %v439 = vunpack.c.l.b16 %v360
        %v440 = vunpack.c.h.b16 %v360
        %v441 = vunpack.c.l.b16 %v361
        %v442 = vunpack.c.h.b16 %v361
        %v443 = vunpack.c.l.b16 %v362
        %v444 = vunpack.c.h.b16 %v362
        %v445 = vunpack.c.l.b16 %v363
        %v446 = vunpack.c.h.b16 %v363
        %v447 = vunpack.c.l.b16 %v364
        %v448 = vunpack.c.h.b16 %v364
        %v449 = vunpack.c.l.b16 %v365
        %v450 = vunpack.c.h.b16 %v365
        %v451 = vunpack.c.l.b16 %v366
        %v452 = vunpack.c.h.b16 %v366
        %v453 = vunpack.c.l.b16 %v367
        %v454 = vunpack.c.h.b16 %v367
        %v455 = vunpack.c.l.b16 %v368
        %v456 = vunpack.c.h.b16 %v368
        %v457 = vunpack.c.l.b16 %v369
        %v458 = vunpack.c.h.b16 %v369
        %v459 = vunpack.c.l.b16 %v370
        %v460 = vunpack.c.h.b16 %v370
        %v461 = vunpack.c.l.b16 %v371
        %v462 = vunpack.c.h.b16 %v371
        %v463 = vunpack.c.l.b16 %v372
        %v464 = vunpack.c.h.b16 %v372
        %v465 = vunpack.c.l.b16 %v373
        %v466 = vunpack.c.h.b16 %v373
        %v467 = vunpack.c.l.b16 %v374
        %v468 = vunpack.c.h.b16 %v374
        %v469 = vunpack.c.l.b16 %v375
        %v470 = vunpack.c.h.b16 %v375
        %v471 = vunpack.c.l.b16 %v376
        %v472 = vunpack.c.h.b16 %v376
        %v473 = vunpack.c.l.b16 %v377
        %v474 = vunpack.c.h.b16 %v377
        %v475 = vunpack.c.l.b16 %v378
        %v476 = vunpack.c.h.b16 %v378
        %v477 = vunpack.c.l.b16 %v379
        %v478 = vunpack.c.h.b16 %v379
        %v479 = vunpack.c.l.b16 %v380
        %v480 = vunpack.c.h.b16 %v380
        %v481 = vunpack.c.l.b16 %v381
        %v482 = vunpack.c.h.b16 %v381
        %v483 = vunpack.c.l.b16 %v382
        %v484 = vunpack.c.h.b16 %v382
        %v485 = vpack.c.b16 %v423, %v421
        %v486 = vpack.c.b16 %v424, %v422
        %v487 = vpack.c.b16 %v427, %v425
        %v488 = vpack.c.b16 %v428, %v426
        %v489 = vpack.c.b16 %v431, %v429
        %v490 = vpack.c.b16 %v432, %v430
        %v491 = vpack.c.b16 %v435, %v433
        %v492 = vpack.c.b16 %v436, %v434
        %v493 = vpack.c.b16 %v439, %v437
        %v494 = vpack.c.b16 %v440, %v438
        %v495 = vpack.c.b16 %v443, %v441
        %v496 = vpack.c.b16 %v444, %v442
        %v497 = vpack.c.b16 %v447, %v445
        %v498 = vpack.c.b16 %v448, %v446
        %v499 = vpack.c.b16 %v451, %v449
        %v500 = vpack.c.b16 %v452, %v450
        %v501 = vpack.c.b16 %v455, %v453
        %v502 = vpack.c.b16 %v456, %v454
        %v503 = vpack.c.b16 %v459, %v457
        %v504 = vpack.c.b16 %v460, %v458
        %v505 = vpack.c.b16 %v463, %v461
        %v506 = vpack.c.b16 %v464, %v462
        %v507 = vpack.c.b16 %v467, %v465
        %v508 = vpack.c.b16 %v468, %v466
        %v509 = vpack.c.b16 %v471, %v469
        %v510 = vpack.c.b16 %v472, %v470
        %v511 = vpack.c.b16 %v475, %v473
        %v512 = vpack.c.b16 %v476, %v474
        %v513 = vpack.c.b16 %v479, %v477
        %v514 = vpack.c.b16 %v480, %v478
        %v515 = vpack.c.b16 %v483, %v481
        %v516 = vpack.c.b16 %v484, %v482
        %549 = vmatpush.bf16.msra.mxu0 %v499
        %550 = vmatpush.bf16.msra.mxu0 %v497
        %551 = vmatpush.bf16.msra.mxu0 %v495
        %552 = vmatpush.bf16.msra.mxu0 %v493
        %553 = vmatpush.bf16.msra.mxu0 %v491
        %554 = vmatpush.bf16.msra.mxu0 %v489
        %555 = vmatpush.bf16.msra.mxu0 %v487
        %556 = vmatpush.bf16.msra.mxu0 %v485
        %557 = vmatmul.bf16.gmra.mxu0 %v347
        %v558 = vpop.f32.mrf.mxu0
        %v559 = vadd.f32 %v385, %v558
        %v560 = vpop.f32.mrf.mxu0
        %v561 = vadd.f32 %v385, %v560
        %562 = vmatmul.bf16.gmra.mxu0 %v349
        %v563 = vpop.f32.mrf.mxu0
        %v564 = vadd.f32 %v385, %v563
        %v565 = vpop.f32.mrf.mxu0
        %v566 = vadd.f32 %v385, %v565
        %567 = vdwg.mxu0
        %568 = vmatpush.bf16.msra.mxu0 %v515
        %569 = vmatpush.bf16.msra.mxu0 %v513
        %570 = vmatpush.bf16.msra.mxu0 %v511
        %571 = vmatpush.bf16.msra.mxu0 %v509
        %572 = vmatpush.bf16.msra.mxu0 %v507
        %573 = vmatpush.bf16.msra.mxu0 %v505
        %574 = vmatpush.bf16.msra.mxu0 %v503
        %575 = vmatpush.bf16.msra.mxu0 %v501
        %576 = vmatmul.bf16.gmra.mxu0 %v348
        %v577 = vpop.f32.mrf.mxu0
        %v578 = vadd.f32 %v559, %v577
        %v579 = vpop.f32.mrf.mxu0
        %v580 = vadd.f32 %v561, %v579
        %581 = vmatmul.bf16.gmra.mxu0 %v350
        %v582 = vpop.f32.mrf.mxu0
        %v583 = vadd.f32 %v564, %v582
        %v584 = vpop.f32.mrf.mxu0
        %v585 = vadd.f32 %v566, %v584
        %586 = vdwg.mxu0
        %587 = vmatpush.bf16.msra.mxu0 %v500
        %588 = vmatpush.bf16.msra.mxu0 %v498
        %589 = vmatpush.bf16.msra.mxu0 %v496
        %590 = vmatpush.bf16.msra.mxu0 %v494
        %591 = vmatpush.bf16.msra.mxu0 %v492
        %592 = vmatpush.bf16.msra.mxu0 %v490
        %593 = vmatpush.bf16.msra.mxu0 %v488
        %594 = vmatpush.bf16.msra.mxu0 %v486
        %595 = vmatmul.bf16.gmra.mxu0 %v347
        %v596 = vpop.f32.mrf.mxu0
        %v597 = vadd.f32 %v386, %v596
        %v598 = vpop.f32.mrf.mxu0
        %v599 = vadd.f32 %v386, %v598
        %600 = vmatmul.bf16.gmra.mxu0 %v349
        %v601 = vpop.f32.mrf.mxu0
        %v602 = vadd.f32 %v386, %v601
        %v603 = vpop.f32.mrf.mxu0
        %v604 = vadd.f32 %v386, %v603
        %605 = vdwg.mxu0
        %606 = vmatpush.bf16.msra.mxu0 %v516
        %607 = vmatpush.bf16.msra.mxu0 %v514
        %608 = vmatpush.bf16.msra.mxu0 %v512
        %609 = vmatpush.bf16.msra.mxu0 %v510
        %610 = vmatpush.bf16.msra.mxu0 %v508
        %611 = vmatpush.bf16.msra.mxu0 %v506
        %612 = vmatpush.bf16.msra.mxu0 %v504
        %613 = vmatpush.bf16.msra.mxu0 %v502
        %614 = vmatmul.bf16.gmra.mxu0 %v348
        %v615 = vpop.f32.mrf.mxu0
        %v616 = vadd.f32 %v597, %v615
        %v617 = vpop.f32.mrf.mxu0
        %v618 = vadd.f32 %v599, %v617
        %619 = vmatmul.bf16.gmra.mxu0 %v350
        %v620 = vpop.f32.mrf.mxu0
        %v621 = vadd.f32 %v602, %v620
        %v622 = vpop.f32.mrf.mxu0
        %v623 = vadd.f32 %v604, %v622
        %624 = vdwg.mxu0
        %v625 = vmax.f32 %v578, 0.0
        %v626 = vmax.f32 %v616, 0.0
        %v627 = vmax.f32 %v580, 0.0
        %v628 = vmax.f32 %v618, 0.0
        %v629 = vmax.f32 %v583, 0.0
        %v630 = vmax.f32 %v621, 0.0
        %v631 = vmax.f32 %v585, 0.0
        %v632 = vmax.f32 %v623, 0.0
        %v633 = vpack.c.bf16 %v627, %v625
        %v634 = vpack.c.bf16 %v628, %v626
        %v635 = vpack.c.bf16 %v631, %v629
        %v636 = vpack.c.bf16 %v632, %v630
        %v637 = vld [vmem:[#allocation8] sm:$0xf]
        %v638 = vld [vmem:[#allocation8 + $0x4] sm:$0xf]
        %v639 = vld [vmem:[#allocation8 + $0x8] sm:$0xf]
        %v640 = vld [vmem:[#allocation8 + $0xc] sm:$0xf]
        %v641 = vld [vmem:[#allocation8 + $0x10] sm:$0xf]
        %v642 = vld [vmem:[#allocation8 + $0x14] sm:$0xf]
        %v643 = vld [vmem:[#allocation8 + $0x18] sm:$0xf]
        %v644 = vld [vmem:[#allocation8 + $0x1c] sm:$0xf]
        %v645 = vld [vmem:[#allocation8 + $0x20] sm:$0xf]
        %v646 = vld [vmem:[#allocation8 + $0x24] sm:$0xf]
        %v647 = vld [vmem:[#allocation8 + $0x28] sm:$0xf]
        %v648 = vld [vmem:[#allocation8 + $0x2c] sm:$0xf]
        %v649 = vld [vmem:[#allocation8 + $0x30] sm:$0xf]
        %v650 = vld [vmem:[#allocation8 + $0x34] sm:$0xf]
        %v651 = vld [vmem:[#allocation8 + $0x38] sm:$0xf]
        %v652 = vld [vmem:[#allocation8 + $0x3c] sm:$0xf]
        %v653 = vld [vmem:[#allocation8 + $0x40] sm:$0xf]
        %v654 = vld [vmem:[#allocation8 + $0x44] sm:$0xf]
        %v655 = vld [vmem:[#allocation8 + $0x48] sm:$0xf]
        %v656 = vld [vmem:[#allocation8 + $0x4c] sm:$0xf]
        %v657 = vld [vmem:[#allocation8 + $0x50] sm:$0xf]
        %v658 = vld [vmem:[#allocation8 + $0x54] sm:$0xf]
        %v659 = vld [vmem:[#allocation8 + $0x58] sm:$0xf]
        %v660 = vld [vmem:[#allocation8 + $0x5c] sm:$0xf]
        %v661 = vld [vmem:[#allocation8 + $0x60] sm:$0xf]
        %v662 = vld [vmem:[#allocation8 + $0x64] sm:$0xf]
        %v663 = vld [vmem:[#allocation8 + $0x68] sm:$0xf]
        %v664 = vld [vmem:[#allocation8 + $0x6c] sm:$0xf]
        %v665 = vld [vmem:[#allocation8 + $0x70] sm:$0xf]
        %v666 = vld [vmem:[#allocation8 + $0x74] sm:$0xf]
        %v667 = vld [vmem:[#allocation8 + $0x78] sm:$0xf]
        %v668 = vld [vmem:[#allocation8 + $0x7c] sm:$0xf]
        %v669 = vld [vmem:[%s4] sm:$0x1]
        %v671 = vperm.slane %v669, 0
        %v705 = vunpack.c.l.b16 %v637
        %v706 = vunpack.c.l.b16 %v638
        %v707 = vunpack.c.l.b16 %v639
        %v708 = vunpack.c.l.b16 %v640
        %v709 = vunpack.c.l.b16 %v641
        %v710 = vunpack.c.l.b16 %v642
        %v711 = vunpack.c.l.b16 %v643
        %v712 = vunpack.c.l.b16 %v644
        %v713 = vunpack.c.l.b16 %v645
        %v714 = vunpack.c.l.b16 %v646
        %v715 = vunpack.c.l.b16 %v647
        %v716 = vunpack.c.l.b16 %v648
        %v717 = vunpack.c.l.b16 %v649
        %v718 = vunpack.c.l.b16 %v650
        %v719 = vunpack.c.l.b16 %v651
        %v720 = vunpack.c.l.b16 %v652
        %v721 = vunpack.c.l.b16 %v653
        %v722 = vunpack.c.l.b16 %v654
        %v723 = vunpack.c.l.b16 %v655
        %v724 = vunpack.c.l.b16 %v656
        %v725 = vunpack.c.l.b16 %v657
        %v726 = vunpack.c.l.b16 %v658
        %v727 = vunpack.c.l.b16 %v659
        %v728 = vunpack.c.l.b16 %v660
        %v729 = vunpack.c.l.b16 %v661
        %v730 = vunpack.c.l.b16 %v662
        %v731 = vunpack.c.l.b16 %v663
        %v732 = vunpack.c.l.b16 %v664
        %v733 = vunpack.c.l.b16 %v665
        %v734 = vunpack.c.l.b16 %v666
        %v735 = vunpack.c.l.b16 %v667
        %v736 = vunpack.c.l.b16 %v668
        %v737 = vpack.c.b16 %v706, %v705
        %v738 = vpack.c.b16 %v708, %v707
        %v739 = vpack.c.b16 %v710, %v709
        %v740 = vpack.c.b16 %v712, %v711
        %v741 = vpack.c.b16 %v714, %v713
        %v742 = vpack.c.b16 %v716, %v715
        %v743 = vpack.c.b16 %v718, %v717
        %v744 = vpack.c.b16 %v720, %v719
        %v745 = vpack.c.b16 %v722, %v721
        %v746 = vpack.c.b16 %v724, %v723
        %v747 = vpack.c.b16 %v726, %v725
        %v748 = vpack.c.b16 %v728, %v727
        %v749 = vpack.c.b16 %v730, %v729
        %v750 = vpack.c.b16 %v732, %v731
        %v751 = vpack.c.b16 %v734, %v733
        %v752 = vpack.c.b16 %v736, %v735
        %769 = vmatpush.bf16.msra.mxu0 %v744
        %770 = vmatpush.bf16.msra.mxu0 %v743
        %771 = vmatpush.bf16.msra.mxu0 %v742
        %772 = vmatpush.bf16.msra.mxu0 %v741
        %773 = vmatpush.bf16.msra.mxu0 %v740
        %774 = vmatpush.bf16.msra.mxu0 %v739
        %775 = vmatpush.bf16.msra.mxu0 %v738
        %776 = vmatpush.bf16.msra.mxu0 %v737
        %777 = vmatmul.bf16.gmra.mxu0 %v633
        %v778 = vpop.f32.mrf.mxu0
        %v779 = vadd.f32 %v671, %v778
        %v780 = vpop.f32.mrf.mxu0
        %v781 = vadd.f32 %v671, %v780
        %782 = vmatmul.bf16.gmra.mxu0 %v635
        %v783 = vpop.f32.mrf.mxu0
        %v784 = vadd.f32 %v671, %v783
        %v785 = vpop.f32.mrf.mxu0
        %v786 = vadd.f32 %v671, %v785
        %787 = vdwg.mxu0
        %788 = vmatpush.bf16.msra.mxu0 %v752
        %789 = vmatpush.bf16.msra.mxu0 %v751
        %790 = vmatpush.bf16.msra.mxu0 %v750
        %791 = vmatpush.bf16.msra.mxu0 %v749
        %792 = vmatpush.bf16.msra.mxu0 %v748
        %793 = vmatpush.bf16.msra.mxu0 %v747
        %794 = vmatpush.bf16.msra.mxu0 %v746
        %795 = vmatpush.bf16.msra.mxu0 %v745
        %796 = vmatmul.bf16.gmra.mxu0 %v634
        %v797 = vpop.f32.mrf.mxu0
        %v798 = vadd.f32 %v779, %v797
        %v799 = vpop.f32.mrf.mxu0
        %v800 = vadd.f32 %v781, %v799
        %801 = vmatmul.bf16.gmra.mxu0 %v636
        %v802 = vpop.f32.mrf.mxu0
        %v803 = vadd.f32 %v784, %v802
        %v804 = vpop.f32.mrf.mxu0
        %v805 = vadd.f32 %v786, %v804
        %806 = vdwg.mxu0
        %v807 = vmax.f32 %v798, 0.0
        %v808 = vmax.f32 %v800, 0.0
        %v809 = vmax.f32 %v803, 0.0
        %v810 = vmax.f32 %v805, 0.0
        %811 = vmax.xlane.f32.xlu0 %v807
        %v812 = vpop.xlane.xlu0 %811
        %813 = vmax.xlane.f32.xlu0 %v808
        %v814 = vpop.xlane.xlu0 %813
        %815 = vmax.xlane.f32.xlu0 %v809
        %v816 = vpop.xlane.xlu0 %815
        %817 = vmax.xlane.f32.xlu0 %v810
        %v818 = vpop.xlane.xlu0 %817
        %v819 = vsub.f32 %v807, %v812
        %v820 = vsub.f32 %v808, %v814
        %v821 = vsub.f32 %v809, %v816
        %v822 = vsub.f32 %v810, %v818
        %v823 = vmul.f32 %v819, 1.442695
        %v824 = vpow.pop %v823
        %v825 = vmul.f32 %v820, 1.442695
        %v826 = vpow.pop %v825
        %v827 = vmul.f32 %v821, 1.442695
        %v828 = vpow.pop %v827
        %v829 = vmul.f32 %v822, 1.442695
        %v830 = vpow.pop %v829
        %v831 = vld [vmem:[#allocation10] sm:$0xff]
        %v832 = vld [vmem:[#allocation10 + $0x8] sm:$0xff]
        %v833 = vld [vmem:[#allocation10 + $0x10] sm:$0xff]
        %v834 = vld [vmem:[#allocation10 + $0x18] sm:$0xff]
        %v835 = vld [vmem:[#allocation10 + $0x20] sm:$0xff]
        %v836 = vld [vmem:[#allocation10 + $0x28] sm:$0xff]
        %v837 = vld [vmem:[#allocation10 + $0x30] sm:$0xff]
        %v838 = vld [vmem:[#allocation10 + $0x38] sm:$0xff]
        %v839 = vld [vmem:[#allocation10 + $0x40] sm:$0xff]
        %v840 = vld [vmem:[#allocation10 + $0x48] sm:$0xff]
        %v841 = vld [vmem:[#allocation10 + $0x50] sm:$0xff]
        %v842 = vld [vmem:[#allocation10 + $0x58] sm:$0xff]
        %v843 = vld [vmem:[#allocation10 + $0x60] sm:$0xff]
        %v844 = vld [vmem:[#allocation10 + $0x68] sm:$0xff]
        %v845 = vld [vmem:[#allocation10 + $0x70] sm:$0xff]
        %v846 = vld [vmem:[#allocation10 + $0x78] sm:$0xff]
        %847 = vmatpush.msra.mxu0 %v846
        %848 = vmatpush.msra.mxu0 %v845
        %849 = vmatpush.msra.mxu0 %v844
        %850 = vmatpush.msra.mxu0 %v843
        %851 = vmatpush.msra.mxu0 %v842
        %852 = vmatpush.msra.mxu0 %v841
        %853 = vmatpush.msra.mxu0 %v840
        %854 = vmatpush.msra.mxu0 %v839
        %855 = vmatpush.msra.mxu0 %v838
        %856 = vmatpush.msra.mxu0 %v837
        %857 = vmatpush.msra.mxu0 %v836
        %858 = vmatpush.msra.mxu0 %v835
        %859 = vmatpush.msra.mxu0 %v834
        %860 = vmatpush.msra.mxu0 %v833
        %861 = vmatpush.msra.mxu0 %v832
        %862 = vmatpush.msra.mxu0 %v831
        %863 = vmatmul.f32.gmra.mxu0 %v824
        %v864 = vpop.f32.mrf.mxu0
        %v865 = vadd.f32 0.0, %v864
        %866 = vmatmul.f32.gmra.mxu0 %v826
        %v867 = vpop.f32.mrf.mxu0
        %v868 = vadd.f32 0.0, %v867
        %869 = vmatmul.f32.gmra.mxu0 %v828
        %v870 = vpop.f32.mrf.mxu0
        %v871 = vadd.f32 0.0, %v870
        %872 = vmatmul.f32.gmra.mxu0 %v830
        %v873 = vpop.f32.mrf.mxu0
        %v874 = vadd.f32 0.0, %v873
        %875 = vdwg.mxu0
        %v876 = vrcp.pop %v865
        %v877 = vmul.f32 %v865, %v876
        %v878 = vsub.f32 1.0, %v877
        %v879 = vmul.f32 %v876, %v878
        %v880 = vadd.f32 %v876, %v879
        %vm881 = vweird.f32 %v865
        %vm882 = vweird.f32 %v876
        %vm883 = vmor %vm881, %vm882
        %v884 = vsel %vm883, %v876, %v880
        %v885 = vand.u32 2147483647, %v865
        %vm886 = vcmp.eq.f32.partialorder %v885, 8.507059e+37
        %v887 = vand.u32 %v865, 2147483648
        %v888 = vor.u32 1.1754944e-38, %v887
        %v889 = vsel %vm886, %v888, %v884
        %v890 = vmul.f32 %v824, %v889
        %v891 = vrcp.pop %v868
        %v892 = vmul.f32 %v868, %v891
        %v893 = vsub.f32 1.0, %v892
        %v894 = vmul.f32 %v891, %v893
        %v895 = vadd.f32 %v891, %v894
        %vm896 = vweird.f32 %v868
        %vm897 = vweird.f32 %v891
        %vm898 = vmor %vm896, %vm897
        %v899 = vsel %vm898, %v891, %v895
        %v900 = vand.u32 2147483647, %v868
        %vm901 = vcmp.eq.f32.partialorder %v900, 8.507059e+37
        %v902 = vand.u32 %v868, 2147483648
        %v903 = vor.u32 1.1754944e-38, %v902
        %v904 = vsel %vm901, %v903, %v899
        %v905 = vmul.f32 %v826, %v904
        %v906 = vrcp.pop %v871
        %v907 = vmul.f32 %v871, %v906
        %v908 = vsub.f32 1.0, %v907
        %v909 = vmul.f32 %v906, %v908
        %v910 = vadd.f32 %v906, %v909
        %vm911 = vweird.f32 %v871
        %vm912 = vweird.f32 %v906
        %vm913 = vmor %vm911, %vm912
        %v914 = vsel %vm913, %v906, %v910
        %v915 = vand.u32 2147483647, %v871
        %vm916 = vcmp.eq.f32.partialorder %v915, 8.507059e+37
        %v917 = vand.u32 %v871, 2147483648
        %v918 = vor.u32 1.1754944e-38, %v917
        %v919 = vsel %vm916, %v918, %v914
        %v920 = vmul.f32 %v828, %v919
        %v921 = vrcp.pop %v874
        %v922 = vmul.f32 %v874, %v921
        %v923 = vsub.f32 1.0, %v922
        %v924 = vmul.f32 %v921, %v923
        %v925 = vadd.f32 %v921, %v924
        %vm926 = vweird.f32 %v874
        %vm927 = vweird.f32 %v921
        %vm928 = vmor %vm926, %vm927
        %v929 = vsel %vm928, %v921, %v925
        %v930 = vand.u32 2147483647, %v874
        %vm931 = vcmp.eq.f32.partialorder %v930, 8.507059e+37
        %v932 = vand.u32 %v874, 2147483648
        %v933 = vor.u32 1.1754944e-38, %v932
        %v934 = vsel %vm931, %v933, %v929
        %v935 = vmul.f32 %v830, %v934
        %936 = vst [vmem:[%s336] sm:$0xff] %v890
        %937 = vst [vmem:[%s336 + $0x8] sm:$0xff] %v905
        %938 = vst [vmem:[%s336 + $0x10] sm:$0xff] %v920
        %939 = vst [vmem:[%s336 + $0x18] sm:$0xff] %v935
        %s940 = sand.u32 %s164, 1
        %s941 = scalar_lea.sflag [#allocation4], %s940
        %s942 = sand.u32 %s164, 1
        %s943 = smul.addr %s942, 32
        %s944 = scalar_lea.vmem [#allocation11], %s943
        // Predicated region
        $region65: #{tpu_custom_call.1} parent=43 // pred_check
          %p945 = pneg %p174
        $region66: #{tpu_custom_call.1} parent=43 // pred_check_branch
          %947 = sbr.rel (%p945) target = $region68
        $region67: #{tpu_custom_call.1} parent=43 // pred_region
          %s948 = smul.u32 4, %s25
          %950 = vsyncadd %s941, 0
          %s951 = smul.addr %s948, 8
          %s952 = scalar_lea.hbm %s6, %s951
          %s953 = sshll.u32 %s944, 4
          %s954 = int_to_ptr.vmem [resolvable:$true] %s953
          %s955 = sshll.u32 %s952, 4
          %s956 = int_to_ptr.hbm [resolvable:$true] %s955
          %961 = dma.vmem_to_hbm [thread:$0]  %s954, 512, %s956, %s941, 128, 128, 8
        $region68: #{tpu_custom_call.1} parent=43 // pred_fallthru
          _
      $region44: #{tpu_custom_call.1} parent=5 // pred_fallthru
        _
      %p962 = scmp.le.s32.totalorder 2, %s20
      // Predicated region
      $region69: #{tpu_custom_call.1} parent=5 // pred_check
        %p963 = pneg %p962
      $region70: #{tpu_custom_call.1} parent=5 // pred_check_branch
        %965 = sbr.rel (%p963) target = $region72
      $region71: #{tpu_custom_call.1} parent=5 // pred_region
        %s966 = ssub.s32 %s20, 2
        // Predicated region
        $region73: #{tpu_custom_call.1} parent=71 // pred_check
          %p967 = pneg %p180
        $region74: #{tpu_custom_call.1} parent=71 // pred_check_branch
          %969 = sbr.rel (%p967) target = $region76
        $region75: #{tpu_custom_call.1} parent=71 // pred_region
          %s970 = sand.u32 %s165, 1
          %s971 = scalar_lea.sflag [#allocation4], %s970
          %s972 = sand.u32 %s165, 1
          %s973 = smul.addr %s972, 32
          %s974 = scalar_lea.vmem [#allocation11], %s973
          %976 = dma.done %s971, 512
        $region76: #{tpu_custom_call.1} parent=71 // pred_fallthru
          _
      $region72: #{tpu_custom_call.1} parent=5 // pred_fallthru
        _
    $region6: #{tpu_custom_call.1} parent=1 // loop_footer
      %s24 = sadd.s32 1, %s20
    $region7: #{tpu_custom_call.1} parent=1 // loop_footer_branch
      %19 = sbr.rel target = $region3
    $region8: #{tpu_custom_call.1} parent=1 // loop_exit
      _
    %977 = vsyncpa [#allocation3], 1
    %s978 = scalar_lea.sflag [#allocation3], 1
    %979 = vsyncpa %s978, 1
    %980 = vsyncpa [#allocation6], 1
    %981 = vsyncpa [#allocation9], 1
    %982 = vsyncpa [#allocation4], 1
    %s983 = scalar_lea.sflag [#allocation4], 1
    %984 = vsyncpa %s983, 1

</llo_original>
